<compile_context>
chip_gen: v7x
topology: tpu7x:2x2x1
jax: 0.10.0
libtpu: 0.0.40
codegen_flags: <defaults>
</compile_context>

<pallas_src>
import numpy as np
import jax
import jax.numpy as jnp
from jax.experimental import pallas as pl
from jax.experimental.pallas import tpu as pltpu


# ----------------------------------------------------------------------------- kernels

def edge_kernel(sdiff_ref, coeff_ref, t_ref, edge_ref):
    """edge = coeff * (T[dst] - T[src]) = coeff_col * (S_diff @ T) for one E-tile."""
    sel = jnp.dot(sdiff_ref[...], t_ref[...],
                  preferred_element_type=jnp.float32)          # (tE, BFp) fp32
    edge_ref[...] = (coeff_ref[...] * sel).astype(edge_ref.dtype)


def delta_kernel(a_ref, t_ref, delta_ref):
    """node_delta = A @ T with A = S_dst^T @ diag-free folded-coeff difference operator."""
    delta_ref[...] = jnp.dot(a_ref[...], t_ref[...].astype(jnp.float32),
                             preferred_element_type=jnp.float32).astype(delta_ref.dtype)


# ----------------------------------------------------------------------- host-side setup

def build_rc_operators(src, dst, edge_map, R, C):
    """One-time host-side (numpy) setup from the static graph + parameters.

    Returns:
      s_diff: (E, N) f32, row e = one_hot(dst[e]) - one_hot(src[e])  (values in {-1,0,+1})
      coeff : (E,)   f32, coeff[e] = (R[e] + R[edge_map[e]]) * C[src[e]]  (reference fp32 order)
      a_mat : (N, N) f32, A = S_dst^T @ (coeff * S_diff), so node_delta = A @ T
    """
    src = np.asarray(src)
    dst = np.asarray(dst)
    edge_map = np.asarray(edge_map)
    Rv = np.asarray(R, np.float32).reshape(-1)     # (E,)
    Cv = np.asarray(C, np.float32).reshape(-1)     # (N,)
    E = src.shape[0]
    N = Cv.shape[0]

    coeff = (Rv + Rv[edge_map]) * Cv[src]          # (E,) f32, same ordering as reference

    s_diff = np.zeros((E, N), np.float32)
    np.add.at(s_diff, (np.arange(E), dst), 1.0)
    np.add.at(s_diff, (np.arange(E), src), -1.0)   # self-loops -> exact 0 row

    a_mat = np.zeros((N, N), np.float32)
    np.add.at(a_mat, (dst, dst), coeff)
    np.add.at(a_mat, (dst, src), -coeff)

    return jnp.asarray(s_diff), jnp.asarray(coeff), jnp.asarray(a_mat)


def _vmem_budget_bytes():
    """Per-chip scoped-VMEM budget.  Conservative fallback is safe on v7x (64 MiB)."""
    cap = None
    try:
        info = pltpu.get_tpu_info()
        for name in ("vmem_capacity_bytes", "vmem_size_bytes", "vmem_bytes"):
            cap = getattr(info, name, None)
            if cap:
                break
    except Exception:
        cap = None
    if not cap:
        return 48 * 1024 * 1024
    return int(min(max(cap * 3 // 4, 32 * 1024 * 1024), 96 * 1024 * 1024))


def _choose_tile_e(E, N, BFp, in_bytes, budget):
    """Largest divisor of E fitting the VMEM budget, multiple of 8 (or == E), MXU-aligned."""
    fixed = 2 * N * BFp * in_bytes                           # resident T (double-buffered)
    per_row = 2 * (N * in_bytes + 128 * 4 + BFp * 4)         # S row + coeff row + edge out row
    cap = max(8, int((budget - fixed) // max(per_row, 1)))
    if E <= cap:
        return E
    for step in (512, 256, 128, 8):                          # prefer MXU-aligned tiles
        t = (cap // step) * step
        while t >= step:
            if E % t == 0:
                return t
            t -= step
    # TODO(synk): pad E up to a multiple of 8 when no conforming divisor exists.
    return E


# ------------------------------------------------------------------------------ wrapper

def rc_update(T, s_diff, coeff, a_mat, *, tile_e=None, vmem_budget=None):
    """Pallas implementation of RCUpdate.forward.

    T:      (B, N, F) node attributes
    s_diff: (E, N) +/-1/0 selection matrix (from build_rc_operators)
    coeff : (E,) fp32 edge coefficients
    a_mat : (N, N) fp32 node-delta operator
    Returns (node_delta (B, N, F), edge_attr (B, E, F)).
    """
    B, N, F = T.shape
    E = s_diff.shape[0]
    BF = B * F
    BFp = ((BF + 127) // 128) * 128                       # lane-dense (multiple of 128)
    out_dtype = T.dtype
    compute_dtype = jnp.bfloat16 if T.dtype == jnp.bfloat16 else jnp.float32
    in_bytes = np.dtype(compute_dtype).itemsize

    # lane-dense node features: (N, B*F) zero-padded to (N, BFp)
    t_lanes = jnp.transpose(T, (1, 0, 2)).reshape(N, BF).astype(compute_dtype)
    if BFp != BF:
        t_lanes = jnp.pad(t_lanes, ((0, 0), (0, BFp - BF)))

    sd = s_diff.astype(compute_dtype)                     # +/-1/0 -> exact in bf16 too
    cf = coeff.reshape(E, 1).astype(jnp.float32)
    am = a_mat.astype(jnp.float32)

    if vmem_budget is None:
        vmem_budget = _vmem_budget_bytes()
    if tile_e is None:
        tile_e = _choose_tile_e(E, N, BFp, in_bytes, vmem_budget)
    assert E % tile_e == 0, "tile_e must divide E"
    assert tile_e == E or tile_e % 8 == 0, "tile_e must be a multiple of 8 (or == E)"
    n_tiles = E // tile_e

    # --- edge_attr: E-tiled, fully parallel grid axis (megacore on v7x) ---
    edge_lanes = pl.pallas_call(
        edge_kernel,
        out_shape=jax.ShapeDtypeStruct((E, BFp), out_dtype),
        grid_spec=pltpu.PrefetchScalarGridSpec(
            num_scalar_prefetch=0,
            grid=(n_tiles,),
            in_specs=[
                pl.BlockSpec((tile_e, N), lambda k: (k, 0)),    # S_diff tile
                pl.BlockSpec((tile_e, 1), lambda k: (k, 0)),    # coeff column
                pl.BlockSpec((N, BFp), lambda k: (0, 0)),       # T, resident across tiles
            ],
            out_specs=pl.BlockSpec((tile_e, BFp), lambda k: (k, 0)),
        ),
        compiler_params=pltpu.CompilerParams(
            dimension_semantics=("parallel",),
            vmem_limit_bytes=vmem_budget),
    )(sd, cf, t_lanes)

    # --- node_delta = A @ T: one tiny matmul, no cross-tile reduction ---
    delta_lanes = pl.pallas_call(
        delta_kernel,
        out_shape=jax.ShapeDtypeStruct((N, BFp), out_dtype),
        grid_spec=pltpu.PrefetchScalarGridSpec(
            num_scalar_prefetch=0,
            grid=(1,),
            in_specs=[
                pl.BlockSpec((N, N), lambda k: (0, 0)),
                pl.BlockSpec((N, BFp), lambda k: (0, 0)),
            ],
            out_specs=pl.BlockSpec((N, BFp), lambda k: (0, 0)),
        ),
        compiler_params=pltpu.CompilerParams(
            dimension_semantics=("arbitrary",),
            vmem_limit_bytes=vmem_budget),
    )(am, t_lanes)

    # strip lane padding and restore (B, *, F) layout for the caller
    node_delta = delta_lanes[:, :BF].reshape(N, B, F).transpose(1, 0, 2)
    edge_attr = edge_lanes[:, :BF].reshape(E, B, F).transpose(1, 0, 2)
    return node_delta, edge_attr


# --------------------------------------------------------------------------------- demo

if __name__ == "__main__":
    # --- bidirectional ring graph (every edge has a reverse edge, as RCUpdate requires) ---
    N = 8
    pairs = []
    for i in range(N):
        pairs.append((i, (i + 1) % N))
        pairs.append(((i + 1) % N, i))
    src = np.array([p[0] for p in pairs], dtype=np.int32)
    dst = np.array([p[1] for p in pairs], dtype=np.int32)
    E = src.shape[0]                        # 16 edges

    emap = {(int(s), int(d)): idx for idx, (s, d) in enumerate(zip(src, dst))}
    edge_map = np.array([emap[(int(d), int(s))] for s, d in zip(src, dst)], dtype=np.int32)

    # --- deterministic parameters (same distributions as the module __init__) ---
    key = jax.random.PRNGKey(0)
    kR, kC, kT = jax.random.split(key, 3)
    R = jax.random.uniform(kR, (1, E, 1), jnp.float32, minval=4.0, maxval=10.0)
    C = jax.random.uniform(kC, (1, N, 1), jnp.float32, minval=0.0001, maxval=0.002)

    # --- input node attributes: B=2 batches, N=8 nodes, F=1 feature (in_features=1) ---
    B, F = 2, 1
    T = jax.random.normal(kT, (B, N, F), jnp.float32)

    # one-time host-side operator construction from the static graph (hoisted setup)
    s_diff, coeff, a_mat = build_rc_operators(src, dst, edge_map, R, C)

    node_delta, edge_attr = rc_update(T, s_diff, coeff, a_mat)
    node_delta = jax.block_until_ready(node_delta)
    edge_attr = jax.block_until_ready(edge_attr)

    # --- plain-JAX reference (mirrors the PyTorch forward) ---
    edge_ref = (R + R[:, edge_map]) * C[:, src] * (T[:, dst] - T[:, src])
    node_ref = jnp.zeros_like(T).at[:, dst, :].add(edge_ref)

    np.testing.assert_allclose(np.asarray(edge_attr), np.asarray(edge_ref), rtol=1e-5, atol=1e-6)
    np.testing.assert_allclose(np.asarray(node_delta), np.asarray(node_ref), rtol=1e-5, atol=1e-6)

    print("KERNEL_OK")
</pallas_src>

<mosaic_0001>
module attributes {stable_mosaic.version = 11 : i64} {
  func.func @edge_kernel(%arg0: i32, %arg1: memref<16x8xf32, #tpu.memory_space<vmem>>, %arg2: memref<16x1xf32, #tpu.memory_space<vmem>>, %arg3: memref<8x128xf32, #tpu.memory_space<vmem>>, %arg4: memref<16x128xf32, #tpu.memory_space<vmem>>) attributes {dimension_semantics = [#tpu.dimension_semantics<parallel>], iteration_bounds = array<i64: 1>, scalar_prefetch = 0 : i64, scratch_operands = 0 : i64, tpu.core_type = #tpu.core_type<tc>, window_params = [{transform_indices = @transform_0, window_bounds = array<i64: 16, 8>}, {transform_indices = @transform_1, window_bounds = array<i64: 16, 1>}, {pipeline_mode = #tpu.pipeline_mode<synchronous>, transform_indices = @transform_2, window_bounds = array<i64: 8, 128>}, {transform_indices = @transform_3, window_bounds = array<i64: 16, 128>}]} {
    %c0 = arith.constant 0 : index
    %c0_0 = arith.constant 0 : index
    %0 = vector.load %arg1[%c0, %c0_0] : memref<16x8xf32, #tpu.memory_space<vmem>>, vector<16x8xf32>
    %c0_1 = arith.constant 0 : index
    %c0_2 = arith.constant 0 : index
    %1 = vector.load %arg3[%c0_1, %c0_2] : memref<8x128xf32, #tpu.memory_space<vmem>>, vector<8x128xf32>
    %cst = arith.constant dense<0.000000e+00> : vector<16x128xf32>
    %2 = tpu.matmul %0, %1, %cst {dimension_numbers = #tpu.dot_dimension_numbers<[1], [0], [0], [1], [0, 0, 1, 1], [], []>} : vector<16x8xf32>, vector<8x128xf32>, vector<16x128xf32> -> vector<16x128xf32>
    %c0_3 = arith.constant 0 : index
    %c0_4 = arith.constant 0 : index
    %3 = vector.load %arg2[%c0_3, %c0_4] : memref<16x1xf32, #tpu.memory_space<vmem>>, vector<16x1xf32>
    %4 = vector.broadcast %3 : vector<16x1xf32> to vector<16x128xf32>
    %5 = arith.mulf %4, %2 : vector<16x128xf32>
    %c0_5 = arith.constant 0 : index
    %c0_6 = arith.constant 0 : index
    %6 = vector.load %arg4[%c0_5, %c0_6] : memref<16x128xf32, #tpu.memory_space<vmem>>, vector<16x128xf32>
    tpu.vector_store %arg4[%c0_5, %c0_6], %5 {strides = array<i32>} : memref<16x128xf32, #tpu.memory_space<vmem>>, vector<16x128xf32>,
    return
  }
  func.func @transform_0(%arg0: i32) -> (i32, i32) {
    %c0_i32 = arith.constant 0 : i32
    %c0_i32_0 = arith.constant 0 : i32
    return %arg0, %c0_i32 : i32, i32
  }
  func.func @transform_1(%arg0: i32) -> (i32, i32) {
    %c0_i32 = arith.constant 0 : i32
    %c0_i32_0 = arith.constant 0 : i32
    return %arg0, %c0_i32 : i32, i32
  }
  func.func @transform_2(%arg0: i32) -> (i32, i32) {
    %c0_i32 = arith.constant 0 : i32
    %c0_i32_0 = arith.constant 0 : i32
    %c0_i32_1 = arith.constant 0 : i32
    return %c0_i32, %c0_i32_0 : i32, i32
  }
  func.func @transform_3(%arg0: i32) -> (i32, i32) {
    %c0_i32 = arith.constant 0 : i32
    %c0_i32_0 = arith.constant 0 : i32
    return %arg0, %c0_i32 : i32, i32
  }
}

</mosaic_0001>

<llo_original>
// kernel: tpu_custom_call.1
$region0: #{tpu_custom_call.1}
  #allocation0 [shape = 'u32[]', space=smem, size = 0x4, offset = 0x4, fixed_abs, tag = 'smem constant byte address 0x4 - core index']
  #allocation1 [shape = 'u32[144,128]{1,0:T(1,128)}', space=vmem, size = 0x12000, scoped, tag = 'internal scratch']
  %s0 = inlined_call_operand.vmem [shape: f32[16,8], index: 0, kind: input, shape index: {}]
  %s1 = inlined_call_operand.vmem [shape: f32[16,1], index: 1, kind: input, shape index: {}]
  %s2 = inlined_call_operand.vmem [shape: f32[8,128], index: 2, kind: input, shape index: {}]
  %s3 = inlined_call_operand.hbm [shape: f32[16,128], index: 3, kind: output, shape index: {}]
  %s4 = sld [smem:[#allocation0]]
  $region22: #{tpu_custom_call.1} parent=0
    _
  %s6 = ssub.s32 1, %s4
  %s7 = scalar_select 0, %s6, %s4
  $region1: #{tpu_custom_call.1} parent=0
    #allocation2 [shape = 'u8[8192]{0}', space=vmem, size = 0x2000, scoped, tag = 'output window, operand 0, single buffered']
    #allocation3 [shape = 's32[1]{0}', space=sflag, size = 0x4, scoped, tag = 'scoped memory for tpu_custom_call.1']
    %8 = vsyncpa [#allocation3], 0
    // Predicated region
    $region2: #{tpu_custom_call.1} parent=1 // pred_check
      _
    $region3: #{tpu_custom_call.1} parent=1 // pred_check_branch
      %10 = sbr.rel (0) target = $region5
    $region4: #{tpu_custom_call.1} parent=1 // pred_region
      _
    $region5: #{tpu_custom_call.1} parent=1 // pred_fallthru
      _
    // Predicated region
    $region6: #{tpu_custom_call.1} parent=1 // pred_check
      _
    $region7: #{tpu_custom_call.1} parent=1 // pred_check_branch
      %12 = sbr.rel (0) target = $region9
    $region8: #{tpu_custom_call.1} parent=1 // pred_region
      _
    $region9: #{tpu_custom_call.1} parent=1 // pred_fallthru
      _
    // Predicated region
    $region10: #{tpu_custom_call.1} parent=1 // pred_check
      _
    $region11: #{tpu_custom_call.1} parent=1 // pred_check_branch
      %14 = sbr.rel (0) target = $region13
    $region12: #{tpu_custom_call.1} parent=1 // pred_region
      _
    $region13: #{tpu_custom_call.1} parent=1 // pred_fallthru
      _
    %v15 = vld [vmem:[%s0] sm:$0xff]
    %v16 = vld [vmem:[%s0 + $0x8] sm:$0xff]
    %v17 = vld [vmem:[%s2] sm:$0xff]
    %vm18 = vcmask 64512
    %v20 = vsel %vm18, %v15, 0
    %v23 = vsel %vm18, %v16, 0
    %25 = vmatprep.subr.mxu0 0.0
    %26 = vmatpush1.msra.mxu0 %v17
    %27 = vmatprep.subr.mxu0 0.0
    %28 = vmatpush1.msra.mxu0 0.0
    %29 = vmatprep.subr.mxu0 0.0
    %30 = vmatpush1.msra.mxu0 0.0
    %31 = vmatprep.subr.mxu0 0.0
    %32 = vmatpush1.msra.mxu0 0.0
    %33 = vmatprep.subr.mxu0 0.0
    %34 = vmatpush1.msra.mxu0 0.0
    %35 = vmatprep.subr.mxu0 0.0
    %36 = vmatpush1.msra.mxu0 0.0
    %37 = vmatprep.subr.mxu0 0.0
    %38 = vmatpush1.msra.mxu0 0.0
    %39 = vmatprep.subr.mxu0 0.0
    %40 = vmatpush1.msra.mxu0 0.0
    %41 = vmatprep.subr.mxu0 0.0
    %42 = vmatpush1.msra.mxu0 0.0
    %43 = vmatprep.subr.mxu0 0.0
    %44 = vmatpush1.msra.mxu0 0.0
    %45 = vmatprep.subr.mxu0 0.0
    %46 = vmatpush1.msra.mxu0 0.0
    %47 = vmatprep.subr.mxu0 0.0
    %48 = vmatpush1.msra.mxu0 0.0
    %49 = vmatprep.subr.mxu0 0.0
    %50 = vmatpush1.msra.mxu0 0.0
    %51 = vmatprep.subr.mxu0 0.0
    %52 = vmatpush1.msra.mxu0 0.0
    %53 = vmatprep.subr.mxu0 0.0
    %54 = vmatpush1.msra.mxu0 0.0
    %55 = vmatprep.subr.mxu0 0.0
    %56 = vmatpush1.msra.mxu0 0.0
    %57 = vmatprep.subr.mxu0 0.0
    %58 = vmatpush1.msra.mxu0 0.0
    %59 = vmatprep.subr.mxu0 0.0
    %60 = vmatpush1.msra.mxu0 0.0
    %61 = vmatprep.subr.mxu0 0.0
    %62 = vmatpush1.msra.mxu0 0.0
    %63 = vmatprep.subr.mxu0 0.0
    %64 = vmatpush1.msra.mxu0 0.0
    %65 = vmatprep.subr.mxu0 0.0
    %66 = vmatpush1.msra.mxu0 0.0
    %67 = vmatprep.subr.mxu0 0.0
    %68 = vmatpush1.msra.mxu0 0.0
    %69 = vmatprep.subr.mxu0 0.0
    %70 = vmatpush1.msra.mxu0 0.0
    %71 = vmatprep.subr.mxu0 0.0
    %72 = vmatpush1.msra.mxu0 0.0
    %73 = vmatprep.subr.mxu0 0.0
    %74 = vmatpush1.msra.mxu0 0.0
    %75 = vmatprep.subr.mxu0 0.0
    %76 = vmatpush1.msra.mxu0 0.0
    %77 = vmatprep.subr.mxu0 0.0
    %78 = vmatpush1.msra.mxu0 0.0
    %79 = vmatprep.subr.mxu0 0.0
    %80 = vmatpush1.msra.mxu0 0.0
    %81 = vmatprep.subr.mxu0 0.0
    %82 = vmatpush1.msra.mxu0 0.0
    %83 = vmatprep.subr.mxu0 0.0
    %84 = vmatpush1.msra.mxu0 0.0
    %85 = vmatprep.subr.mxu0 0.0
    %86 = vmatpush1.msra.mxu0 0.0
    %87 = vmatprep.subr.mxu0 0.0
    %88 = vmatpush1.msra.mxu0 0.0
    %89 = vmatprep.mubr.f32.mxu0 0.0
    %90 = vmatmul.mubr.f32.gmra.mrb[0].mxu0 %v20
    %v91 = vpop.f32.mrb[0].mxu0
    %v92 = vadd.f32 0.0, %v91
    %v93 = vpop.f32.mrb[0].mxu0
    %94 = vmatprep.mubr.f32.mxu0 0.0
    %95 = vmatmul.mubr.f32.gmra.mrb[0].mxu0 %v23
    %v96 = vpop.f32.mrb[0].mxu0
    %v97 = vadd.f32 0.0, %v96
    %v98 = vpop.f32.mrb[0].mxu0
    %99 = vdwg.mxu0
    %v100 = vld [vmem:[%s1] sm:$0xff]
    %v101 = vld [vmem:[%s1 + $0x8] sm:$0xff]
    %103 = vset.pattern.permute.xlu0 0
    %104 = vperm.xlu0 %103, %v100
    %v105 = vpop.permute.xlu0 %104
    %108 = vset.pattern.permute.xlu0 0
    %109 = vperm.xlu0 %108, %v101
    %v110 = vpop.permute.xlu0 %109
    %v112 = vmul.f32 %v105, %v92
    %v113 = vmul.f32 %v110, %v97
    %114 = vst [vmem:[#allocation2] sm:$0xff] %v112
    %115 = vst [vmem:[#allocation2 + $0x8] sm:$0xff] %v113
    // Predicated region
    $region14: #{tpu_custom_call.1} parent=1 // pred_check
      _
    $region15: #{tpu_custom_call.1} parent=1 // pred_check_branch
      %117 = sbr.rel (0) target = $region17
    $region16: #{tpu_custom_call.1} parent=1 // pred_region
      %s119 = ssub.s32 256, 256
      %120 = vsyncadd [#allocation3], %s119
      %s121 = sshll.u32 [#allocation2], 4
      %s122 = int_to_ptr.vmem [resolvable:$true] %s121
      %127 = dma.vmem_to_hbm [thread:$0]  %s122, 256, %s3, [#allocation3], 128, 128, 8
    $region17: #{tpu_custom_call.1} parent=1 // pred_fallthru
      _
    // Predicated region
    $region18: #{tpu_custom_call.1} parent=1 // pred_check
      _
    $region19: #{tpu_custom_call.1} parent=1 // pred_check_branch
      %129 = sbr.rel (0) target = $region21
    $region20: #{tpu_custom_call.1} parent=1 // pred_region
      %130 = dma.done [#allocation3], 256
    $region21: #{tpu_custom_call.1} parent=1 // pred_fallthru
      _
    %131 = vsyncpa [#allocation3], 1

</llo_original>
